<compile_context>
chip_gen: v6e
topology: v6e:2x2x1
jax: 0.10.0
libtpu: 0.0.40
codegen_flags: <defaults>
</compile_context>

<pallas_src>
import jax
import jax.numpy as jnp
from jax import lax
from jax.experimental import pallas as pl
from jax.experimental.pallas import tpu as pltpu


# ---------------------------------------------------------------------------
# Hardware-aware sizing helpers
# ---------------------------------------------------------------------------

def _round_up(x, m):
    return ((x + m - 1) // m) * m


def _vmem_limit_bytes():
    # Conservative fallback (v7x per-TC physical VMEM) if the query is not
    # available; 75% of physical leaves headroom for compiler scratch.
    cap = 64 * 1024 * 1024
    try:
        info = pltpu.get_tpu_info()
        cap = int(getattr(info, "vmem_capacity_bytes", cap))
    except Exception:
        pass
    return max(32 * 1024 * 1024, (cap * 3) // 4)


def _largest_divisor_leq(n, cap):
    best = 1
    for d in range(1, max(1, min(n, cap)) + 1):
        if n % d == 0:
            best = d
    return best


def _pick_bb(B, per_batch_work):
    """Batch elements per grid step; always keep >=2 batch blocks (v7x 2 TCs)."""
    if B <= 1:
        return 1
    if per_batch_work <= 128 * 128:
        cap = 32
    elif per_batch_work <= 512 * 512:
        cap = 8
    else:
        cap = 1
    cap = max(1, min(cap, B // 2))
    return _largest_divisor_leq(B, cap)


def _pick_tn(N, D, O, Cp, bb, itemsize, vmem_limit):
    """Rows per streamed tile for the over-determined fused gram."""
    if N <= 8:
        return N
    acc_bytes = 2 * bb * Cp * Cp * 4                       # resident accumulator (x2 safety)
    budget = max(vmem_limit // 2 - acc_bytes, 4 * 1024 * 1024)
    per_row = bb * (2 * (D + O) * itemsize + Cp * itemsize)  # dbl-buffered x/y + z scratch
    max_rows = budget // max(per_row, 1)
    tn = min(N, max(8, max_rows), 4096)
    if tn >= N:
        return N
    if tn >= 128:
        tn = (tn // 128) * 128
    else:
        tn = (tn // 8) * 8
    return max(tn, 8)


def _pick_td(D, N, bb, itemsize, vmem_limit, acc_bytes):
    """Feature columns per streamed tile for the under-determined path."""
    if D <= 512:
        return D
    budget = max(vmem_limit // 2 - acc_bytes, 4 * 1024 * 1024)
    per_col = 2 * bb * N * itemsize
    max_cols = max(128, budget // max(per_col, 1))
    td = min(D, max_cols, 2048)
    td = max(128, (td // 128) * 128)
    return D if td >= D else td


# ---------------------------------------------------------------------------
# Forward pass
# ---------------------------------------------------------------------------

def ridge_regressor_forward(reprs, y, lambda_param, reg_coeff=None,
                            tile_n=None, tile_d=None):
    """Equivalent of RidgeRegressor.forward: returns (w, b)."""
    if reg_coeff is None:
        # act() in the DeepTime RidgeRegressor is Softplus.
        reg_coeff = jax.nn.softplus(lambda_param)
    reg = jnp.asarray(reg_coeff, jnp.float32)

    B, N, D = reprs.shape
    O = y.shape[-1]
    D1 = D + 1

    in_dt = jnp.dtype(reprs.dtype)
    if in_dt not in (jnp.dtype(jnp.float32), jnp.dtype(jnp.bfloat16)):
        # TODO(synk): only f32/bf16 streaming paths implemented; other dtypes cast once.
        reprs = reprs.astype(jnp.float32)
        y = y.astype(jnp.float32)
        in_dt = jnp.dtype(jnp.float32)
    compute_dt = in_dt                      # stream & multiply in native dtype
    itemsize = in_dt.itemsize
    vmem_limit = _vmem_limit_bytes()

    if N >= D:
        # ---- Over-determined: (Xa^T Xa + reg I) W = Xa^T Y,  Xa = [X, 1] ----
        C = D1 + O                          # columns of z = [X | 1 | Y]
        Cp = _round_up(C, 128)              # lane-dense accumulator width

        bb = _pick_bb(B, N * max(D, O))
        while bb > 1 and 2 * bb * Cp * Cp * 4 > vmem_limit // 3:
            bb = _largest_divisor_leq(B, bb - 1)
        tn = tile_n if tile_n is not None else _pick_tn(
            N, D, O, Cp, bb, itemsize, vmem_limit)
        n_tiles = pl.cdiv(N, tn)
        need_mask = (N % tn) != 0

        def fused_gram_kernel(x_ref, y_ref, gram_ref):
            @pl.when(pl.program_id(1) == 0)
            def _init():
                gram_ref[...] = jnp.zeros_like(gram_ref)

            x = x_ref[...].astype(compute_dt)        # (bb, tn, D)
            yv = y_ref[...].astype(compute_dt)       # (bb, tn, O)
            bb_, tn_, _ = x.shape
            parts = [x, jnp.ones((bb_, tn_, 1), compute_dt), yv]
            if Cp > C:
                parts.append(jnp.zeros((bb_, tn_, Cp - C), compute_dt))
            z = jnp.concatenate(parts, axis=-1)      # (bb, tn, Cp)
            if need_mask:
                # Ragged last tile: zero invalid rows (also zeroes the ones col,
                # so the corner count stays exactly N).
                row = (lax.broadcasted_iota(jnp.int32, (1, tn_, 1), 1)
                       + pl.program_id(1) * tn_)
                z = jnp.where(row < N, z, jnp.zeros((), compute_dt))
            # z^T z with contraction over the sample axis; f32 accumulation.
            gram_ref[...] += lax.dot_general(
                z, z, dimension_numbers=(((1,), (1,)), ((0,), (0,))),
                preferred_element_type=jnp.float32)

        gram = pl.pallas_call(
            fused_gram_kernel,
            out_shape=jax.ShapeDtypeStruct((B, Cp, Cp), jnp.float32),
            grid=(B // bb, n_tiles),
            in_specs=[
                pl.BlockSpec((bb, tn, D), lambda b, n: (b, n, 0)),
                pl.BlockSpec((bb, tn, O), lambda b, n: (b, n, 0)),
            ],
            out_specs=pl.BlockSpec((bb, Cp, Cp), lambda b, n: (b, 0, 0)),
            compiler_params=pltpu.CompilerParams(
                dimension_semantics=("parallel", "arbitrary"),
                vmem_limit_bytes=vmem_limit,
            ),
            cost_estimate=pl.CostEstimate(
                flops=2 * B * N * Cp * Cp,
                transcendentals=0,
                bytes_accessed=itemsize * B * N * (D + O) + 4 * B * Cp * Cp,
            ),
        )(reprs, y)

        # XtX, xsum, N-corner, XtY, ysum all fall out of the fused gram.
        A = gram[:, :D1, :D1] + reg * jnp.eye(D1, dtype=jnp.float32)
        Bmat = gram[:, :D1, D1:C]
        # TODO(synk): torch.linalg.solve has no Pallas primitive; tiny batched LU stays in XLA.
        weights = jnp.linalg.solve(A, Bmat)          # (B, D1, O)
        w = weights[:, :D]
        b = weights[:, D:D1]
        return w, b

    # ---- Under-determined: W = Xa^T (Xa Xa^T + reg I)^{-1} Y ----
    bb = _pick_bb(B, max(N * D, N * N))
    while bb > 1 and 2 * bb * N * N * 4 > vmem_limit // 3:
        bb = _largest_divisor_leq(B, bb - 1)
    acc_bytes = 2 * bb * N * N * 4
    td = tile_d if tile_d is not None else _pick_td(
        D, N, bb, itemsize, vmem_limit, acc_bytes)
    d_tiles = pl.cdiv(D, td)
    need_mask_d = (D % td) != 0

    def gram_nn_kernel(reg_ref, x_ref, a_ref):
        di = pl.program_id(1)

        @pl.when(di == 0)
        def _init():
            a_ref[...] = jnp.zeros_like(a_ref)

        x = x_ref[...].astype(compute_dt)            # (bb, N, td)
        if need_mask_d:
            col = (lax.broadcasted_iota(jnp.int32, (1, 1, td), 2) + di * td)
            x = jnp.where(col < D, x, jnp.zeros((), compute_dt))
        a_ref[...] += lax.dot_general(
            x, x, dimension_numbers=(((2,), (2,)), ((0,), (0,))),
            preferred_element_type=jnp.float32)

        @pl.when(di == pl.num_programs(1) - 1)
        def _fin():
            n_ = a_ref.shape[-1]
            r = lax.broadcasted_iota(jnp.int32, (n_, n_), 0)
            c = lax.broadcasted_iota(jnp.int32, (n_, n_), 1)
            # +1 everywhere from the appended ones column; +reg on the diagonal.
            a_ref[...] += (jnp.where(r == c, reg_ref[0], jnp.float32(0.0))
                           + jnp.float32(1.0))[None]

    reg_arr = reg.reshape(1)
    A = pl.pallas_call(
        gram_nn_kernel,
        out_shape=jax.ShapeDtypeStruct((B, N, N), jnp.float32),
        grid=(B // bb, d_tiles),
        in_specs=[
            pl.BlockSpec(memory_space=pltpu.MemorySpace.SMEM),
            pl.BlockSpec((bb, N, td), lambda b, d: (b, 0, d)),
        ],
        out_specs=pl.BlockSpec((bb, N, N), lambda b, d: (b, 0, 0)),
        compiler_params=pltpu.CompilerParams(
            dimension_semantics=("parallel", "arbitrary"),
            vmem_limit_bytes=vmem_limit,
        ),
        cost_estimate=pl.CostEstimate(
            flops=2 * B * N * N * D,
            transcendentals=0,
            bytes_accessed=itemsize * B * N * D + 4 * B * N * N,
        ),
    )(reg_arr, reprs)

    # TODO(synk): torch.linalg.solve has no Pallas primitive; batched LU stays in XLA.
    Z = jnp.linalg.solve(A, y.astype(jnp.float32))   # (B, N, O)
    b = jnp.sum(Z, axis=1, keepdims=True)            # bias row of Xa^T Z

    Op = O if O < 64 else _round_up(O, 128)          # lane-pad only if not wasteful

    def xtz_kernel(x_ref, z_ref, w_ref):
        x = x_ref[...].astype(jnp.float32)           # (bb, N, td)
        z = z_ref[...]                               # (bb, N, O) f32
        if Op > O:
            z = jnp.concatenate(
                [z, jnp.zeros(z.shape[:2] + (Op - O,), z.dtype)], axis=-1)
        w_ref[...] = lax.dot_general(
            x, z, dimension_numbers=(((1,), (1,)), ((0,), (0,))),
            preferred_element_type=jnp.float32)

    w_pad = pl.pallas_call(
        xtz_kernel,
        out_shape=jax.ShapeDtypeStruct((B, D, Op), jnp.float32),
        grid=(B // bb, d_tiles),
        in_specs=[
            pl.BlockSpec((bb, N, td), lambda b, d: (b, 0, d)),
            pl.BlockSpec((bb, N, O), lambda b, d: (b, 0, 0)),
        ],
        out_specs=pl.BlockSpec((bb, td, Op), lambda b, d: (b, d, 0)),
        compiler_params=pltpu.CompilerParams(
            dimension_semantics=("parallel", "parallel"),
            vmem_limit_bytes=vmem_limit,
        ),
        cost_estimate=pl.CostEstimate(
            flops=2 * B * N * D * Op,
            transcendentals=0,
            bytes_accessed=itemsize * B * N * D + 4 * B * N * O + 4 * B * D * Op,
        ),
    )(reprs, Z)

    w = w_pad[:, :, :O] if Op > O else w_pad
    return w, b


# ---------------------------------------------------------------------------
# Pure-JAX reference (mirrors the PyTorch semantics, LU solve)
# ---------------------------------------------------------------------------

def _reference(reprs, y, lambda_param, reg_coeff=None):
    if reg_coeff is None:
        reg_coeff = jax.nn.softplus(lambda_param)
    B, N, D = reprs.shape
    Xa = jnp.concatenate([reprs, jnp.ones((B, N, 1), reprs.dtype)], axis=-1)
    if N >= D:
        A = jnp.einsum("bnd,bne->bde", Xa, Xa) + reg_coeff * jnp.eye(D + 1)
        Bm = jnp.einsum("bnd,bno->bdo", Xa, y)
        weights = jnp.linalg.solve(A, Bm)
    else:
        A = jnp.einsum("bnd,bmd->bnm", Xa, Xa) + reg_coeff * jnp.eye(N)
        Z = jnp.linalg.solve(A, y)
        weights = jnp.einsum("bnd,bno->bdo", Xa, Z)
    return weights[:, :-1], weights[:, -1:]


if __name__ == "__main__":
    key = jax.random.PRNGKey(0)
    ks = jax.random.split(key, 8)

    # Parameter: _lambda scalar, deterministic init (lambda_init = 0.0).
    lambda_param = jnp.asarray(0.0, dtype=jnp.float32)

    # --- Over-determined path (n_samples >= n_dim) ---
    B, N, D, O = 2, 16, 8, 4
    reprs = jax.random.normal(ks[0], (B, N, D), dtype=jnp.float32)
    x = jax.random.normal(ks[1], (B, N, O), dtype=jnp.float32)
    w, b = ridge_regressor_forward(reprs, x, lambda_param)
    jax.block_until_ready((w, b))
    w_ref, b_ref = _reference(reprs, x, lambda_param)
    assert w.shape == (B, D, O) and b.shape == (B, 1, O)
    assert jnp.allclose(w, w_ref, atol=1e-3, rtol=1e-3)
    assert jnp.allclose(b, b_ref, atol=1e-3, rtol=1e-3)

    # --- Over-determined path, ragged N tiles (exercises in-kernel row mask) ---
    Br, Nr, Dr, Or = 2, 20, 8, 4
    reprs_r = jax.random.normal(ks[4], (Br, Nr, Dr), dtype=jnp.float32)
    x_r = jax.random.normal(ks[5], (Br, Nr, Or), dtype=jnp.float32)
    w_r, b_r = ridge_regressor_forward(reprs_r, x_r, lambda_param, tile_n=8)
    jax.block_until_ready((w_r, b_r))
    w_rr, b_rr = _reference(reprs_r, x_r, lambda_param)
    assert jnp.allclose(w_r, w_rr, atol=1e-3, rtol=1e-3)
    assert jnp.allclose(b_r, b_rr, atol=1e-3, rtol=1e-3)

    # --- Under-determined path (n_samples < n_dim) ---
    B2, N2, D2, O2 = 2, 8, 16, 4
    reprs2 = jax.random.normal(ks[2], (B2, N2, D2), dtype=jnp.float32)
    x2 = jax.random.normal(ks[3], (B2, N2, O2), dtype=jnp.float32)
    w2, b2 = ridge_regressor_forward(reprs2, x2, lambda_param)
    jax.block_until_ready((w2, b2))
    w2_ref, b2_ref = _reference(reprs2, x2, lambda_param)
    assert w2.shape == (B2, D2, O2) and b2.shape == (B2, 1, O2)
    assert jnp.allclose(w2, w2_ref, atol=1e-3, rtol=1e-3)
    assert jnp.allclose(b2, b2_ref, atol=1e-3, rtol=1e-3)

    # --- Under-determined path with D tiling (exercises column mask + tiled X^T Z) ---
    B3, N3, D3, O3 = 2, 16, 160, 4
    reprs3 = jax.random.normal(ks[6], (B3, N3, D3), dtype=jnp.float32)
    x3 = jax.random.normal(ks[7], (B3, N3, O3), dtype=jnp.float32)
    w3, b3 = ridge_regressor_forward(reprs3, x3, lambda_param, tile_d=128)
    jax.block_until_ready((w3, b3))
    w3_ref, b3_ref = _reference(reprs3, x3, lambda_param)
    assert w3.shape == (B3, D3, O3) and b3.shape == (B3, 1, O3)
    assert jnp.allclose(w3, w3_ref, atol=1e-3, rtol=1e-3)
    assert jnp.allclose(b3, b3_ref, atol=1e-3, rtol=1e-3)

    print("KERNEL_OK")
</pallas_src>

<mosaic_0001>
module attributes {stable_mosaic.version = 11 : i64} {
  func.func @fused_gram_kernel(%arg0: i32, %arg1: i32, %arg2: memref<1x16x8xf32, #tpu.memory_space<vmem>>, %arg3: memref<1x16x4xf32, #tpu.memory_space<vmem>>, %arg4: memref<1x128x128xf32, #tpu.memory_space<vmem>>) attributes {dimension_semantics = [#tpu.dimension_semantics<parallel>, #tpu.dimension_semantics<arbitrary>], iteration_bounds = array<i64: 2, 1>, scalar_prefetch = 0 : i64, scratch_operands = 0 : i64, tpu.core_type = #tpu.core_type<tc>, window_params = [{transform_indices = @transform_0, window_bounds = array<i64: 1, 16, 8>}, {transform_indices = @transform_1, window_bounds = array<i64: 1, 16, 4>}, {transform_indices = @transform_2, window_bounds = array<i64: 1, 128, 128>}]} {
    %c0_i32 = arith.constant 0 : i32
    %0 = arith.cmpi eq, %arg1, %c0_i32 : i32
    %1 = arith.extui %0 : i1 to i32
    %c0_i32_0 = arith.constant 0 : i32
    %2 = arith.cmpi ne, %1, %c0_i32_0 : i32
    scf.if %2 {
      %cst_14 = arith.constant 0.000000e+00 : f32
      %12 = vector.broadcast %cst_14 : f32 to vector<1x128x128xf32>
      %c0_15 = arith.constant 0 : index
      %c0_16 = arith.constant 0 : index
      %c0_17 = arith.constant 0 : index
      %13 = vector.load %arg4[%c0_15, %c0_16, %c0_17] : memref<1x128x128xf32, #tpu.memory_space<vmem>>, vector<1x128x128xf32>
      tpu.vector_store %arg4[%c0_15, %c0_16, %c0_17], %12 {strides = array<i32>} : memref<1x128x128xf32, #tpu.memory_space<vmem>>, vector<1x128x128xf32>,
    } else {
    }
    %c0 = arith.constant 0 : index
    %c0_1 = arith.constant 0 : index
    %c0_2 = arith.constant 0 : index
    %3 = vector.load %arg2[%c0, %c0_1, %c0_2] : memref<1x16x8xf32, #tpu.memory_space<vmem>>, vector<1x16x8xf32>
    %c0_3 = arith.constant 0 : index
    %c0_4 = arith.constant 0 : index
    %c0_5 = arith.constant 0 : index
    %4 = vector.load %arg3[%c0_3, %c0_4, %c0_5] : memref<1x16x4xf32, #tpu.memory_space<vmem>>, vector<1x16x4xf32>
    %cst = arith.constant 1.000000e+00 : f32
    %5 = vector.broadcast %cst : f32 to vector<1x16x1xf32>
    %cst_6 = arith.constant 0.000000e+00 : f32
    %6 = vector.broadcast %cst_6 : f32 to vector<1x16x115xf32>
    %7 = tpu.concatenate %3, %5, %4, %6 in 2 : vector<1x16x8xf32>, vector<1x16x1xf32>, vector<1x16x4xf32>, vector<1x16x115xf32> -> vector<1x16x128xf32>
    %c0_7 = arith.constant 0 : index
    %c0_8 = arith.constant 0 : index
    %c0_9 = arith.constant 0 : index
    %8 = vector.load %arg4[%c0_7, %c0_8, %c0_9] : memref<1x128x128xf32, #tpu.memory_space<vmem>>, vector<1x128x128xf32>
    %cst_10 = arith.constant dense<0.000000e+00> : vector<1x128x128xf32>
    %9 = tpu.matmul %7, %7, %cst_10 {dimension_numbers = #tpu.dot_dimension_numbers<[1], [1], [2], [2], [0, 0, 0, 2, 1, 2], [0], [0]>} : vector<1x16x128xf32>, vector<1x16x128xf32>, vector<1x128x128xf32> -> vector<1x128x128xf32>
    %10 = arith.addf %8, %9 : vector<1x128x128xf32>
    %c0_11 = arith.constant 0 : index
    %c0_12 = arith.constant 0 : index
    %c0_13 = arith.constant 0 : index
    %11 = vector.load %arg4[%c0_11, %c0_12, %c0_13] : memref<1x128x128xf32, #tpu.memory_space<vmem>>, vector<1x128x128xf32>
    tpu.vector_store %arg4[%c0_11, %c0_12, %c0_13], %10 {strides = array<i32>} : memref<1x128x128xf32, #tpu.memory_space<vmem>>, vector<1x128x128xf32>,
    return
  }
  func.func @transform_0(%arg0: i32, %arg1: i32) -> (i32, i32, i32) {
    %c0_i32 = arith.constant 0 : i32
    %c0_i32_0 = arith.constant 0 : i32
    return %arg0, %arg1, %c0_i32 : i32, i32, i32
  }
  func.func @transform_1(%arg0: i32, %arg1: i32) -> (i32, i32, i32) {
    %c0_i32 = arith.constant 0 : i32
    %c0_i32_0 = arith.constant 0 : i32
    return %arg0, %arg1, %c0_i32 : i32, i32, i32
  }
  func.func @transform_2(%arg0: i32, %arg1: i32) -> (i32, i32, i32) {
    %c0_i32 = arith.constant 0 : i32
    %c0_i32_0 = arith.constant 0 : i32
    %c0_i32_1 = arith.constant 0 : i32
    return %arg0, %c0_i32, %c0_i32_0 : i32, i32, i32
  }
}

</mosaic_0001>

<llo_original>
// kernel: tpu_custom_call.1
$region0: #{tpu_custom_call.1}
  #allocation0 [shape = 'u32[]', space=smem, size = 0x4, offset = 0x4, fixed_abs, tag = 'smem constant byte address 0x4 - core index']
  #allocation1 [shape = 'u32[144,128]{1,0:T(1,128)}', space=vmem, size = 0x12000, scoped, tag = 'internal scratch']
  %s0 = inlined_call_operand.vmem [shape: f32[2,16,8], index: 0, kind: input, shape index: {}]
  %s1 = inlined_call_operand.vmem [shape: f32[2,16,4], index: 1, kind: input, shape index: {}]
  %s2 = inlined_call_operand.hbm [shape: f32[2,128,128], index: 2, kind: output, shape index: {}]
  %s3 = sld [smem:[#allocation0]]
  $region45: #{tpu_custom_call.1} parent=0
    _
  %s5 = ssub.s32 1, %s3
  %s6 = scalar_select 0, %s5, %s3
  $region1: #{tpu_custom_call.1} parent=0
    #allocation2 [shape = 'u8[131072]{0}', space=vmem, size = 0x20000, scoped, tag = 'output window, operand 0']
    #allocation3 [shape = 's32[2]{0}', space=sflag, size = 0x8, scoped, tag = 'scoped memory for tpu_custom_call.1']
    %7 = vsyncpa [#allocation3], 0
    %s8 = scalar_lea.sflag [#allocation3], 1
    %9 = vsyncpa %s8, 0
    loop: start=0, step=1, limit=4
    $region2: #{tpu_custom_call.1} parent=1 // loop_pre_header
      _
    $region3: #{tpu_custom_call.1} parent=1 // loop_header
      %s11 = sphi 0, %s15
      %p12 = scmp.ge.s32.totalorder %s11, 4
      %s18 = sphi 0, %s30
      %s19 = sphi 0, %s26
      %s20 = sphi 0, %s18
      %s21 = sphi 0, %s19
      %s22 = sphi 0, %s20
      %s23 = sphi 0, %s21
      %s35 = sphi 0, %s37
      %s38 = sphi 0, %s35
      %s39 = sphi 0, %s38
      %s55 = sphi 0, %s39
      %s63 = sphi 0, %s65
      %s66 = sphi 0, %s63
      %s67 = sphi 0, %s66
      %s83 = sphi 0, %s67
      %s89 = sphi 0, %s91
      %s92 = sphi 0, %s89
      %s93 = sphi 0, %s92
      %s109 = sphi 0, %s93
    $region4: #{tpu_custom_call.1} parent=1 // loop_header_branch
      %14 = sbr.rel (%p12) target = $region8
    $region5: #{tpu_custom_call.1} parent=1 // loop_body
      %s16 = ssub.s32 %s11, 1
      %s17 = ssub.s32 %s11, 2
      %s24 = sadd.s32 1, %s19
      %p25 = scmp.ge.s32.totalorder %s24, 1
      %s26 = scalar_select %p25, 0, %s24
      %s27 = sadd.s32 1, %s18
      %s28 = scalar_select %p25, %s27, %s18
      %p29 = scmp.ge.s32.totalorder %s28, 2
      %s30 = scalar_select %p29, 0, %s28
      %s31 = ssub.s32 %s18, %s30
      %s32 = ssub.s32 %s19, %s26
      %s33 = sor.u32 %s31, %s32
      %p34 = scmp.eq.s32.totalorder %s33, 0
      %s36 = sadd.s32 %s35, 1
      %s37 = scalar_select %p34, %s35, %s36
      %p40 = pneg %p34
      %p41 = scmp.eq.s32.totalorder %s11, 1
      %p42 = por %p40, %p41
      %p43 = scmp.ne.s32.totalorder %s35, %s38
      %p44 = scmp.eq.s32.totalorder %s11, 0
      %p45 = por %p43, %p44
      %p46 = scmp.ne.s32.totalorder %s35, %s38
      %p47 = scmp.eq.s32.totalorder %s16, 1
      %p48 = por %p46, %p47
      %p49 = scmp.ne.s32.totalorder %s38, %s39
      %p50 = scmp.eq.s32.totalorder %s16, 0
      %p51 = por %p49, %p50
      %p52 = scmp.ne.s32.totalorder %s38, %s39
      %p53 = scmp.eq.s32.totalorder %s17, 1
      %p54 = por %p52, %p53
      %p56 = scmp.ne.s32.totalorder %s39, %s55
      %p57 = scmp.eq.s32.totalorder %s17, 0
      %p58 = por %p56, %p57
      %s59 = ssub.s32 %s18, %s30
      %s60 = ssub.s32 %s19, %s26
      %s61 = sor.u32 %s59, %s60
      %p62 = scmp.eq.s32.totalorder %s61, 0
      %s64 = sadd.s32 %s63, 1
      %s65 = scalar_select %p62, %s63, %s64
      %p68 = pneg %p62
      %p69 = scmp.eq.s32.totalorder %s11, 1
      %p70 = por %p68, %p69
      %p71 = scmp.ne.s32.totalorder %s63, %s66
      %p72 = scmp.eq.s32.totalorder %s11, 0
      %p73 = por %p71, %p72
      %p74 = scmp.ne.s32.totalorder %s63, %s66
      %p75 = scmp.eq.s32.totalorder %s16, 1
      %p76 = por %p74, %p75
      %p77 = scmp.ne.s32.totalorder %s66, %s67
      %p78 = scmp.eq.s32.totalorder %s16, 0
      %p79 = por %p77, %p78
      %p80 = scmp.ne.s32.totalorder %s66, %s67
      %p81 = scmp.eq.s32.totalorder %s17, 1
      %p82 = por %p80, %p81
      %p84 = scmp.ne.s32.totalorder %s67, %s83
      %p85 = scmp.eq.s32.totalorder %s17, 0
      %p86 = por %p84, %p85
      %s87 = ssub.s32 %s18, %s30
      %p88 = scmp.eq.s32.totalorder %s87, 0
      %s90 = sadd.s32 %s89, 1
      %s91 = scalar_select %p88, %s89, %s90
      %p94 = pneg %p88
      %p95 = scmp.eq.s32.totalorder %s11, 1
      %p96 = por %p94, %p95
      %p97 = scmp.ne.s32.totalorder %s89, %s92
      %p98 = scmp.eq.s32.totalorder %s11, 0
      %p99 = por %p97, %p98
      %p100 = scmp.ne.s32.totalorder %s89, %s92
      %p101 = scmp.eq.s32.totalorder %s16, 1
      %p102 = por %p100, %p101
      %p103 = scmp.ne.s32.totalorder %s92, %s93
      %p104 = scmp.eq.s32.totalorder %s16, 0
      %p105 = por %p103, %p104
      %p106 = scmp.ne.s32.totalorder %s92, %s93
      %p107 = scmp.eq.s32.totalorder %s17, 1
      %p108 = por %p106, %p107
      %p110 = scmp.ne.s32.totalorder %s93, %s109
      %p111 = scmp.eq.s32.totalorder %s17, 0
      %p112 = por %p110, %p111
      %p113 = scmp.le.s32.totalorder 1, %s11
      %p114 = scmp.lt.s32.totalorder %s11, 3
      %p115 = pnand %p113, %p114
      %p116 = pneg %p115
      // Predicated region
      $region9: #{tpu_custom_call.1} parent=5 // pred_check
        _
      $region10: #{tpu_custom_call.1} parent=5 // pred_check_branch
        %118 = sbr.rel (%p115) target = $region12
      $region11: #{tpu_custom_call.1} parent=5 // pred_region
        %s119 = ssub.s32 %s11, 1
      $region12: #{tpu_custom_call.1} parent=5 // pred_fallthru
        _
      %p120 = scmp.lt.s32.totalorder %s11, 2
      // Predicated region
      $region13: #{tpu_custom_call.1} parent=5 // pred_check
        %p121 = pneg %p120
      $region14: #{tpu_custom_call.1} parent=5 // pred_check_branch
        %123 = sbr.rel (%p121) target = $region16
      $region15: #{tpu_custom_call.1} parent=5 // pred_region
        // Predicated region
        $region17: #{tpu_custom_call.1} parent=15 // pred_check
          %p124 = pneg %p45
        $region18: #{tpu_custom_call.1} parent=15 // pred_check_branch
          %126 = sbr.rel (%p124) target = $region20
        $region19: #{tpu_custom_call.1} parent=15 // pred_region
          %s127 = smul.u32 2, %s19
          %p128 = scmp.lt.s32.totalorder %s18, 1
          %s129 = scalar_select %p128, %s18, 1
          %p130 = scmp.lt.s32.totalorder %s127, 1
          %s131 = scalar_select %p130, %s127, 1
          %s132 = smul.addr %s129, 2
          %s133 = sadd.s32 %s131, %s132
          %s134 = smul.addr %s133, 8
          %s135 = scalar_lea.vmem %s0, %s134
          %s136 = smul.u32 2, %s19
        $region20: #{tpu_custom_call.1} parent=15 // pred_fallthru
          _
        // Predicated region
        $region21: #{tpu_custom_call.1} parent=15 // pred_check
          %p137 = pneg %p73
        $region22: #{tpu_custom_call.1} parent=15 // pred_check_branch
          %139 = sbr.rel (%p137) target = $region24
        $region23: #{tpu_custom_call.1} parent=15 // pred_region
          %s140 = smul.u32 2, %s19
          %p141 = scmp.lt.s32.totalorder %s18, 1
          %s142 = scalar_select %p141, %s18, 1
          %p143 = scmp.lt.s32.totalorder %s140, 1
          %s144 = scalar_select %p143, %s140, 1
          %s145 = smul.addr %s142, 2
          %s146 = sadd.s32 %s144, %s145
          %s147 = smul.addr %s146, 8
          %s148 = scalar_lea.vmem %s1, %s147
          %s149 = smul.u32 2, %s19
        $region24: #{tpu_custom_call.1} parent=15 // pred_fallthru
          _
      $region16: #{tpu_custom_call.1} parent=5 // pred_fallthru
        _
      %p150 = scmp.le.s32.totalorder 1, %s11
      %p151 = scmp.lt.s32.totalorder %s11, 3
      %p152 = pnand %p150, %p151
      %p153 = pneg %p152
      // Predicated region
      $region25: #{tpu_custom_call.1} parent=5 // pred_check
        _
      $region26: #{tpu_custom_call.1} parent=5 // pred_check_branch
        %155 = sbr.rel (%p152) target = $region28
      $region27: #{tpu_custom_call.1} parent=5 // pred_region
        %s156 = ssub.s32 %s11, 1
        %s157 = smul.u32 2, %s21
        %p158 = scmp.lt.s32.totalorder %s20, 1
        %s159 = scalar_select %p158, %s20, 1
        %p160 = scmp.lt.s32.totalorder %s157, 1
        %s161 = scalar_select %p160, %s157, 1
        %s162 = smul.addr %s159, 2
        %s163 = sadd.s32 %s161, %s162
        %s164 = smul.addr %s163, 8
        %s165 = scalar_lea.vmem %s0, %s164
        %p166 = pneg %p51
        %p167 = pneg %p48
        %s168 = smul.u32 2, %s21
        %p169 = scmp.lt.s32.totalorder %s20, 1
        %s170 = scalar_select %p169, %s20, 1
        %p171 = scmp.lt.s32.totalorder %s168, 1
        %s172 = scalar_select %p171, %s168, 1
        %s173 = smul.addr %s170, 2
        %s174 = sadd.s32 %s172, %s173
        %s175 = smul.addr %s174, 8
        %s176 = scalar_lea.vmem %s1, %s175
        %p177 = pneg %p79
        %p178 = pneg %p76
        %p179 = pneg %p105
        %p180 = pneg %p102
        %s181 = sand.u32 %s92, 1
        %s182 = scalar_lea.sflag [#allocation3], %s181
        %s183 = sand.u32 %s92, 1
        %s184 = smul.addr %s183, 128
        %s185 = scalar_lea.vmem [#allocation2], %s184
        %s186 = smul.u32 2, %s21
        %p187 = scmp.lt.s32.totalorder %s20, 1
        %s188 = scalar_select %p187, %s20, 1
        %p189 = scmp.lt.s32.totalorder %s186, 1
        %s190 = scalar_select %p189, %s186, 1
        %s191 = smul.addr %s188, 2
        %s192 = sadd.s32 %s190, %s191
        %s193 = smul.addr %s192, 8
        %s194 = scalar_lea.vmem %s0, %s193
        %s195 = smul.u32 2, %s21
        %s196 = smul.u32 2, %s21
        %p197 = scmp.lt.s32.totalorder %s20, 1
        %s198 = scalar_select %p197, %s20, 1
        %p199 = scmp.lt.s32.totalorder %s196, 1
        %s200 = scalar_select %p199, %s196, 1
        %s201 = smul.addr %s198, 2
        %s202 = sadd.s32 %s200, %s201
        %s203 = smul.addr %s202, 8
        %s204 = scalar_lea.vmem %s1, %s203
        %s205 = smul.u32 2, %s21
        %p206 = scmp.eq.s32.totalorder %s21, 0
        // Predicated region
        $region29: #{tpu_custom_call.1} parent=27 // pred_check
          %p207 = pneg %p206
        $region30: #{tpu_custom_call.1} parent=27 // pred_check_branch
          %209 = sbr.rel (%p207) target = $region32
        $region31: #{tpu_custom_call.1} parent=27 // pred_region
          %210 = vst [vmem:[%s185] sm:$0xff] 0.0
          %211 = vst [vmem:[%s185 + $0x8] sm:$0xff] 0.0
          %212 = vst [vmem:[%s185 + $0x10] sm:$0xff] 0.0
          %213 = vst [vmem:[%s185 + $0x18] sm:$0xff] 0.0
          %214 = vst [vmem:[%s185 + $0x20] sm:$0xff] 0.0
          %215 = vst [vmem:[%s185 + $0x28] sm:$0xff] 0.0
          %216 = vst [vmem:[%s185 + $0x30] sm:$0xff] 0.0
          %217 = vst [vmem:[%s185 + $0x38] sm:$0xff] 0.0
          %218 = vst [vmem:[%s185 + $0x40] sm:$0xff] 0.0
          %219 = vst [vmem:[%s185 + $0x48] sm:$0xff] 0.0
          %220 = vst [vmem:[%s185 + $0x50] sm:$0xff] 0.0
          %221 = vst [vmem:[%s185 + $0x58] sm:$0xff] 0.0
          %222 = vst [vmem:[%s185 + $0x60] sm:$0xff] 0.0
          %223 = vst [vmem:[%s185 + $0x68] sm:$0xff] 0.0
          %224 = vst [vmem:[%s185 + $0x70] sm:$0xff] 0.0
          %225 = vst [vmem:[%s185 + $0x78] sm:$0xff] 0.0
        $region32: #{tpu_custom_call.1} parent=27 // pred_fallthru
          _
        %v226 = vld [vmem:[%s194] sm:$0xff]
        %v227 = vld [vmem:[%s194 + $0x8] sm:$0xff]
        %v228 = vld [vmem:[%s204] sm:$0xff]
        %v229 = vld [vmem:[%s204 + $0x8] sm:$0xff]
        %232 = vrot.lane.b32.xlu0 %v228, 9
        %v233 = vpop.permute.xlu0 %232
        %234 = vrot.lane.b32.xlu0 %v229, 9
        %v235 = vpop.permute.xlu0 %234
        %vm238 = vcmask 64512
        %v239 = vsel %vm238, %v226, 1.0
        %v240 = vsel %vm238, %v227, 1.0
        %vm241 = vcmask 72704
        %v242 = vsel %vm241, %v239, %v233
        %v243 = vsel %vm241, %v240, %v235
        %vm244 = vcmask 105472
        %v245 = vsel %vm244, %v242, 0.0
        %v246 = vsel %vm244, %v243, 0.0
        %v247 = vld [vmem:[%s185] sm:$0xff]
        %v248 = vld [vmem:[%s185 + $0x8] sm:$0xff]
        %v249 = vld [vmem:[%s185 + $0x10] sm:$0xff]
        %v250 = vld [vmem:[%s185 + $0x18] sm:$0xff]
        %v251 = vld [vmem:[%s185 + $0x20] sm:$0xff]
        %v252 = vld [vmem:[%s185 + $0x28] sm:$0xff]
        %v253 = vld [vmem:[%s185 + $0x30] sm:$0xff]
        %v254 = vld [vmem:[%s185 + $0x38] sm:$0xff]
        %v255 = vld [vmem:[%s185 + $0x40] sm:$0xff]
        %v256 = vld [vmem:[%s185 + $0x48] sm:$0xff]
        %v257 = vld [vmem:[%s185 + $0x50] sm:$0xff]
        %v258 = vld [vmem:[%s185 + $0x58] sm:$0xff]
        %v259 = vld [vmem:[%s185 + $0x60] sm:$0xff]
        %v260 = vld [vmem:[%s185 + $0x68] sm:$0xff]
        %v261 = vld [vmem:[%s185 + $0x70] sm:$0xff]
        %v262 = vld [vmem:[%s185 + $0x78] sm:$0xff]
        %263 = vxpose.xlu0.b32.start [1/16] %v245, 128
        %264 = vxpose.xlu0.b32.cont [2/16] %v246, 128
        %265 = vxpose.xlu0.b32.cont [3/16] 0.0, 128
        %266 = vxpose.xlu0.b32.cont [4/16] 0.0, 128
        %267 = vxpose.xlu0.b32.cont [5/16] 0.0, 128
        %268 = vxpose.xlu0.b32.cont [6/16] 0.0, 128
        %269 = vxpose.xlu0.b32.cont [7/16] 0.0, 128
        %270 = vxpose.xlu0.b32.cont [8/16] 0.0, 128
        %271 = vxpose.xlu0.b32.cont [9/16] 0.0, 128
        %272 = vxpose.xlu0.b32.cont [10/16] 0.0, 128
        %273 = vxpose.xlu0.b32.cont [11/16] 0.0, 128
        %274 = vxpose.xlu0.b32.cont [12/16] 0.0, 128
        %275 = vxpose.xlu0.b32.cont [13/16] 0.0, 128
        %276 = vxpose.xlu0.b32.cont [14/16] 0.0, 128
        %277 = vxpose.xlu0.b32.cont [15/16] 0.0, 128
        %278 = vxpose.xlu0.b32.end [16/16] 0.0, 128
        %v279 = vpop.trf.xlu0
        %v280 = vpop.trf.xlu0
        %v281 = vpop.trf.xlu0
        %v282 = vpop.trf.xlu0
        %v283 = vpop.trf.xlu0
        %v284 = vpop.trf.xlu0
        %v285 = vpop.trf.xlu0
        %v286 = vpop.trf.xlu0
        %v287 = vpop.trf.xlu0
        %v288 = vpop.trf.xlu0
        %v289 = vpop.trf.xlu0
        %v290 = vpop.trf.xlu0
        %v291 = vpop.trf.xlu0
        %v292 = vpop.trf.xlu0
        %v293 = vpop.trf.xlu0
        %v294 = vpop.trf.xlu0
        %vm295 = vcmask 130048
        %v297 = vsel %vm295, %v279, 0
        %v300 = vsel %vm295, %v280, 0
        %v303 = vsel %vm295, %v281, 0
        %v306 = vsel %vm295, %v282, 0
        %v309 = vsel %vm295, %v283, 0
        %v312 = vsel %vm295, %v284, 0
        %v315 = vsel %vm295, %v285, 0
        %v318 = vsel %vm295, %v286, 0
        %v321 = vsel %vm295, %v287, 0
        %v324 = vsel %vm295, %v288, 0
        %v327 = vsel %vm295, %v289, 0
        %v330 = vsel %vm295, %v290, 0
        %v333 = vsel %vm295, %v291, 0
        %v336 = vsel %vm295, %v292, 0
        %v339 = vsel %vm295, %v293, 0
        %v342 = vsel %vm295, %v294, 0
        %344 = vmatprep.subr.mxu0 0.0
        %345 = vmatpush1.msra.mxu0 0.0
        %346 = vmatprep.subr.mxu0 0.0
        %347 = vmatpush1.msra.mxu0 0.0
        %348 = vmatprep.subr.mxu0 0.0
        %349 = vmatpush1.msra.mxu0 0.0
        %350 = vmatprep.subr.mxu0 0.0
        %351 = vmatpush1.msra.mxu0 0.0
        %352 = vmatprep.subr.mxu0 0.0
        %353 = vmatpush1.msra.mxu0 0.0
        %354 = vmatprep.subr.mxu0 0.0
        %355 = vmatpush1.msra.mxu0 0.0
        %356 = vmatprep.subr.mxu0 0.0
        %357 = vmatpush1.msra.mxu0 0.0
        %358 = vmatprep.subr.mxu0 0.0
        %359 = vmatpush1.msra.mxu0 0.0
        %360 = vmatprep.subr.mxu0 0.0
        %361 = vmatpush1.msra.mxu0 0.0
        %362 = vmatprep.subr.mxu0 0.0
        %363 = vmatpush1.msra.mxu0 0.0
        %364 = vmatprep.subr.mxu0 0.0
        %365 = vmatpush1.msra.mxu0 0.0
        %366 = vmatprep.subr.mxu0 0.0
        %367 = vmatpush1.msra.mxu0 0.0
        %368 = vmatprep.subr.mxu0 0.0
        %369 = vmatpush1.msra.mxu0 0.0
        %370 = vmatprep.subr.mxu0 0.0
        %371 = vmatpush1.msra.mxu0 0.0
        %372 = vmatprep.subr.mxu0 0.0
        %373 = vmatpush1.msra.mxu0 %v246
        %374 = vmatprep.subr.mxu0 0.0
        %375 = vmatpush1.msra.mxu0 %v245
        %376 = vmatprep.subr.mxu0 0.0
        %377 = vmatpush2.msra.mxu0 0.0
        %378 = vmatprep.subr.mxu0 0.0
        %379 = vmatpush2.msra.mxu0 0.0
        %380 = vmatprep.subr.mxu0 0.0
        %381 = vmatpush2.msra.mxu0 0.0
        %382 = vmatprep.subr.mxu0 0.0
        %383 = vmatpush2.msra.mxu0 0.0
        %384 = vmatprep.subr.mxu0 0.0
        %385 = vmatpush2.msra.mxu0 0.0
        %386 = vmatprep.subr.mxu0 0.0
        %387 = vmatpush2.msra.mxu0 0.0
        %388 = vmatprep.subr.mxu0 0.0
        %389 = vmatpush2.msra.mxu0 0.0
        %390 = vmatprep.subr.mxu0 0.0
        %391 = vmatpush2.msra.mxu0 0.0
        %392 = vmatprep.subr.mxu0 0.0
        %393 = vmatpush2.msra.mxu0 0.0
        %394 = vmatprep.subr.mxu0 0.0
        %395 = vmatpush2.msra.mxu0 0.0
        %396 = vmatprep.subr.mxu0 0.0
        %397 = vmatpush2.msra.mxu0 0.0
        %398 = vmatprep.subr.mxu0 0.0
        %399 = vmatpush2.msra.mxu0 0.0
        %400 = vmatprep.subr.mxu0 0.0
        %401 = vmatpush2.msra.mxu0 0.0
        %402 = vmatprep.subr.mxu0 0.0
        %403 = vmatpush2.msra.mxu0 0.0
        %404 = vmatprep.subr.mxu0 0.0
        %405 = vmatpush2.msra.mxu0 0.0
        %406 = vmatprep.subr.mxu0 0.0
        %407 = vmatpush2.msra.mxu0 0.0
        %408 = vmatprep.mubr.f32.mxu0 0.0
        %409 = vmatmul.mubr.f32.gmra.mxu0 %v297
        %v410 = vpop.f32.mrf.mxu0
        %v411 = vadd.f32 0.0, %v410
        %v412 = vpop.f32.mrf.mxu0
        %413 = vmatprep.mubr.f32.mxu0 0.0
        %414 = vmatmul.mubr.f32.gmra.mxu0 %v300
        %v415 = vpop.f32.mrf.mxu0
        %v416 = vadd.f32 0.0, %v415
        %v417 = vpop.f32.mrf.mxu0
        %418 = vmatprep.mubr.f32.mxu0 0.0
        %419 = vmatmul.mubr.f32.gmra.mxu0 %v303
        %v420 = vpop.f32.mrf.mxu0
        %v421 = vadd.f32 0.0, %v420
        %v422 = vpop.f32.mrf.mxu0
        %423 = vmatprep.mubr.f32.mxu0 0.0
        %424 = vmatmul.mubr.f32.gmra.mxu0 %v306
        %v425 = vpop.f32.mrf.mxu0
        %v426 = vadd.f32 0.0, %v425
        %v427 = vpop.f32.mrf.mxu0
        %428 = vmatprep.mubr.f32.mxu0 0.0
        %429 = vmatmul.mubr.f32.gmra.mxu0 %v309
        %v430 = vpop.f32.mrf.mxu0
        %v431 = vadd.f32 0.0, %v430
        %v432 = vpop.f32.mrf.mxu0
        %433 = vmatprep.mubr.f32.mxu0 0.0
        %434 = vmatmul.mubr.f32.gmra.mxu0 %v312
        %v435 = vpop.f32.mrf.mxu0
        %v436 = vadd.f32 0.0, %v435
        %v437 = vpop.f32.mrf.mxu0
        %438 = vmatprep.mubr.f32.mxu0 0.0
        %439 = vmatmul.mubr.f32.gmra.mxu0 %v315
        %v440 = vpop.f32.mrf.mxu0
        %v441 = vadd.f32 0.0, %v440
        %v442 = vpop.f32.mrf.mxu0
        %443 = vmatprep.mubr.f32.mxu0 0.0
        %444 = vmatmul.mubr.f32.gmra.mxu0 %v318
        %v445 = vpop.f32.mrf.mxu0
        %v446 = vadd.f32 0.0, %v445
        %v447 = vpop.f32.mrf.mxu0
        %448 = vmatprep.mubr.f32.mxu0 0.0
        %449 = vmatmul.mubr.f32.gmra.mxu0 %v321
        %v450 = vpop.f32.mrf.mxu0
        %v451 = vadd.f32 0.0, %v450
        %v452 = vpop.f32.mrf.mxu0
        %453 = vmatprep.mubr.f32.mxu0 0.0
        %454 = vmatmul.mubr.f32.gmra.mxu0 %v324
        %v455 = vpop.f32.mrf.mxu0
        %v456 = vadd.f32 0.0, %v455
        %v457 = vpop.f32.mrf.mxu0
        %458 = vmatprep.mubr.f32.mxu0 0.0
        %459 = vmatmul.mubr.f32.gmra.mxu0 %v327
        %v460 = vpop.f32.mrf.mxu0
        %v461 = vadd.f32 0.0, %v460
        %v462 = vpop.f32.mrf.mxu0
        %463 = vmatprep.mubr.f32.mxu0 0.0
        %464 = vmatmul.mubr.f32.gmra.mxu0 %v330
        %v465 = vpop.f32.mrf.mxu0
        %v466 = vadd.f32 0.0, %v465
        %v467 = vpop.f32.mrf.mxu0
        %468 = vmatprep.mubr.f32.mxu0 0.0
        %469 = vmatmul.mubr.f32.gmra.mxu0 %v333
        %v470 = vpop.f32.mrf.mxu0
        %v471 = vadd.f32 0.0, %v470
        %v472 = vpop.f32.mrf.mxu0
        %473 = vmatprep.mubr.f32.mxu0 0.0
        %474 = vmatmul.mubr.f32.gmra.mxu0 %v336
        %v475 = vpop.f32.mrf.mxu0
        %v476 = vadd.f32 0.0, %v475
        %v477 = vpop.f32.mrf.mxu0
        %478 = vmatprep.mubr.f32.mxu0 0.0
        %479 = vmatmul.mubr.f32.gmra.mxu0 %v339
        %v480 = vpop.f32.mrf.mxu0
        %v481 = vadd.f32 0.0, %v480
        %v482 = vpop.f32.mrf.mxu0
        %483 = vmatprep.mubr.f32.mxu0 0.0
        %484 = vmatmul.mubr.f32.gmra.mxu0 %v342
        %v485 = vpop.f32.mrf.mxu0
        %v486 = vadd.f32 0.0, %v485
        %v487 = vpop.f32.mrf.mxu0
        %488 = vdwg.mxu0
        %v489 = vadd.f32 %v247, %v411
        %v490 = vadd.f32 %v248, %v416
        %v491 = vadd.f32 %v249, %v421
        %v492 = vadd.f32 %v250, %v426
        %v493 = vadd.f32 %v251, %v431
        %v494 = vadd.f32 %v252, %v436
        %v495 = vadd.f32 %v253, %v441
        %v496 = vadd.f32 %v254, %v446
        %v497 = vadd.f32 %v255, %v451
        %v498 = vadd.f32 %v256, %v456
        %v499 = vadd.f32 %v257, %v461
        %v500 = vadd.f32 %v258, %v466
        %v501 = vadd.f32 %v259, %v471
        %v502 = vadd.f32 %v260, %v476
        %v503 = vadd.f32 %v261, %v481
        %v504 = vadd.f32 %v262, %v486
        %505 = vst [vmem:[%s185] sm:$0xff] %v489
        %506 = vst [vmem:[%s185 + $0x8] sm:$0xff] %v490
        %507 = vst [vmem:[%s185 + $0x10] sm:$0xff] %v491
        %508 = vst [vmem:[%s185 + $0x18] sm:$0xff] %v492
        %509 = vst [vmem:[%s185 + $0x20] sm:$0xff] %v493
        %510 = vst [vmem:[%s185 + $0x28] sm:$0xff] %v494
        %511 = vst [vmem:[%s185 + $0x30] sm:$0xff] %v495
        %512 = vst [vmem:[%s185 + $0x38] sm:$0xff] %v496
        %513 = vst [vmem:[%s185 + $0x40] sm:$0xff] %v497
        %514 = vst [vmem:[%s185 + $0x48] sm:$0xff] %v498
        %515 = vst [vmem:[%s185 + $0x50] sm:$0xff] %v499
        %516 = vst [vmem:[%s185 + $0x58] sm:$0xff] %v500
        %517 = vst [vmem:[%s185 + $0x60] sm:$0xff] %v501
        %518 = vst [vmem:[%s185 + $0x68] sm:$0xff] %v502
        %519 = vst [vmem:[%s185 + $0x70] sm:$0xff] %v503
        %520 = vst [vmem:[%s185 + $0x78] sm:$0xff] %v504
        %s521 = sand.u32 %s92, 1
        %s522 = scalar_lea.sflag [#allocation3], %s521
        %s523 = sand.u32 %s92, 1
        %s524 = smul.addr %s523, 128
        %s525 = scalar_lea.vmem [#allocation2], %s524
        // Predicated region
        $region33: #{tpu_custom_call.1} parent=27 // pred_check
          %p526 = pneg %p102
        $region34: #{tpu_custom_call.1} parent=27 // pred_check_branch
          %528 = sbr.rel (%p526) target = $region36
        $region35: #{tpu_custom_call.1} parent=27 // pred_region
          %s530 = ssub.s32 2048, 2048
          %531 = vsyncadd %s522, %s530
          %s532 = smul.addr %s20, 16
          %s533 = smul.addr %s532, 128
          %s534 = scalar_lea.hbm %s2, %s533
          %s535 = sshll.u32 %s525, 4
          %s536 = int_to_ptr.vmem [resolvable:$true] %s535
          %541 = dma.vmem_to_hbm [thread:$0]  %s536, 2048, %s534, %s522, 128, 128, 8
        $region36: #{tpu_custom_call.1} parent=27 // pred_fallthru
          _
      $region28: #{tpu_custom_call.1} parent=5 // pred_fallthru
        _
      %p542 = scmp.le.s32.totalorder 2, %s11
      // Predicated region
      $region37: #{tpu_custom_call.1} parent=5 // pred_check
        %p543 = pneg %p542
      $region38: #{tpu_custom_call.1} parent=5 // pred_check_branch
        %545 = sbr.rel (%p543) target = $region40
      $region39: #{tpu_custom_call.1} parent=5 // pred_region
        %s546 = ssub.s32 %s11, 2
        // Predicated region
        $region41: #{tpu_custom_call.1} parent=39 // pred_check
          %p547 = pneg %p108
        $region42: #{tpu_custom_call.1} parent=39 // pred_check_branch
          %549 = sbr.rel (%p547) target = $region44
        $region43: #{tpu_custom_call.1} parent=39 // pred_region
          %s550 = sand.u32 %s93, 1
          %s551 = scalar_lea.sflag [#allocation3], %s550
          %s552 = sand.u32 %s93, 1
          %s553 = smul.addr %s552, 128
          %s554 = scalar_lea.vmem [#allocation2], %s553
          %555 = dma.done %s551, 2048
        $region44: #{tpu_custom_call.1} parent=39 // pred_fallthru
          _
      $region40: #{tpu_custom_call.1} parent=5 // pred_fallthru
        _
    $region6: #{tpu_custom_call.1} parent=1 // loop_footer
      %s15 = sadd.s32 1, %s11
    $region7: #{tpu_custom_call.1} parent=1 // loop_footer_branch
      %10 = sbr.rel target = $region3
    $region8: #{tpu_custom_call.1} parent=1 // loop_exit
      _
    %556 = vsyncpa [#allocation3], 1
    %s557 = scalar_lea.sflag [#allocation3], 1
    %558 = vsyncpa %s557, 1

</llo_original>
